<compile_context>
chip_gen: v7x
topology: tpu7x:2x2x1
jax: 0.10.0
libtpu: 0.0.40
codegen_flags: <defaults>
</compile_context>

<pallas_src>
import functools

import jax
import jax.numpy as jnp
import numpy as np
from jax import lax
from jax.experimental import pallas as pl
from jax.experimental.pallas import tpu as pltpu


_LANE = 128


def _round_up(x, m):
    return (x + m - 1) // m * m


@functools.lru_cache(maxsize=1)
def _tpu_config():
    """Generation-aware VMEM budgets.

    block_budget : target bytes for ONE block.  Input and output blocks are each
                   double-buffered by the pipeline, so live VMEM ~= 4x block.
    vmem_limit   : explicit scoped-VMEM limit (defaults are only 16 MiB on v5e /
                   32 MiB on v6e+, far below what the raised budget needs).
    """
    try:
        vmem_cap = int(pltpu.get_tpu_info().vmem_capacity_bytes)
    except Exception:
        vmem_cap = 64 * 1024 * 1024  # conservative (v7x-sized) fallback
    block_budget = max(1 << 20, min(8 * 1024 * 1024, vmem_cap // 12))
    vmem_limit = min(vmem_cap * 3 // 4, 96 * 1024 * 1024)
    return block_budget, vmem_limit


def _sublane_multiple(itemsize):
    # second-minor packing tile: 8 for f32, 16 for bf16, 32 for int8
    return (8 * 4) // itemsize


def _pick_tiles(R, L, itemsize, budget, min_row_programs=2):
    """Pick (row_tile, lane_tile) for a (R, L) array.

    Lane tile is a multiple of 128, row tile a multiple of the dtype's sublane
    packing; edge blocks are handled by the cdiv grid (padded / clipped by
    Pallas) rather than full-extent fallbacks, so awkward shapes never request
    whole-array blocks.  Row tile is capped so the 'parallel' row axis has at
    least `min_row_programs` programs (keeps both v7x TensorCores busy).
    """
    sub = _sublane_multiple(itemsize)
    L_pad = _round_up(L, _LANE)
    R_pad = _round_up(R, sub)
    max_lt = max(_LANE, (budget // (sub * itemsize)) // _LANE * _LANE)
    lt = min(L_pad, max_lt)
    max_rt = max(sub, (budget // (lt * itemsize)) // sub * sub)
    rt = min(R_pad, max_rt)
    if R_pad >= min_row_programs * sub:
        rt = min(rt, _round_up(pl.cdiv(R_pad, min_row_programs), sub))
    return rt, lt


# --------------------------------------------------------------------------
# Kernel 1: row-wise sum / sum-of-squares (streaming f32 accumulation)
# --------------------------------------------------------------------------
def _row_stats_kernel(x_ref, sum_ref, sumsq_ref, *, L, lt):
    @pl.when(pl.program_id(1) == 0)
    def _():
        sum_ref[...] = jnp.zeros_like(sum_ref)
        sumsq_ref[...] = jnp.zeros_like(sumsq_ref)

    x = x_ref[...].astype(jnp.float32)
    if L % lt != 0:
        # Mask the padded tail columns of the last lane-block (padded rows are
        # clipped by Pallas on writeback, so they need no mask).
        col = lax.broadcasted_iota(jnp.int32, x.shape, 1) + pl.program_id(1) * lt
        x = jnp.where(col < L, x, 0.0)
    sum_ref[...] += jnp.sum(x, axis=-1, keepdims=True)
    sumsq_ref[...] += jnp.sum(x * x, axis=-1, keepdims=True)


def _row_stats(x2):
    """Per-row sum and sum-of-squares (f32) of a (R, L) array."""
    R, L = x2.shape
    itemsize = x2.dtype.itemsize
    budget, vmem_limit = _tpu_config()
    rt, lt = _pick_tiles(R, L, itemsize, budget)
    outs = pl.pallas_call(
        functools.partial(_row_stats_kernel, L=L, lt=lt),
        grid=(pl.cdiv(R, rt), pl.cdiv(L, lt)),
        in_specs=[pl.BlockSpec((rt, lt), lambda i, j: (i, j))],
        out_specs=[
            pl.BlockSpec((rt, 1), lambda i, j: (i, 0)),
            pl.BlockSpec((rt, 1), lambda i, j: (i, 0)),
        ],
        out_shape=[
            jax.ShapeDtypeStruct((R, 1), jnp.float32),
            jax.ShapeDtypeStruct((R, 1), jnp.float32),
        ],
        compiler_params=pltpu.CompilerParams(
            dimension_semantics=("parallel", "arbitrary"),
            vmem_limit_bytes=vmem_limit,
        ),
        cost_estimate=pl.CostEstimate(
            flops=3 * R * L, transcendentals=0,
            bytes_accessed=R * L * itemsize + 2 * R * 4),
    )(x2)
    return outs[0], outs[1]


# --------------------------------------------------------------------------
# Kernel 2: per-row affine apply  (y = x * scale_row + shift_row)
# --------------------------------------------------------------------------
def _row_affine_kernel(x_ref, scale_ref, shift_ref, o_ref):
    x = x_ref[...].astype(jnp.float32)
    o_ref[...] = (x * scale_ref[...] + shift_ref[...]).astype(o_ref.dtype)


def _row_affine(x2, scale_rows, shift_rows):
    R, L = x2.shape
    itemsize = x2.dtype.itemsize
    budget, vmem_limit = _tpu_config()
    rt, lt = _pick_tiles(R, L, itemsize, budget)
    # TODO(synk): set input_output_aliases={0: 0} when callers can donate x.
    return pl.pallas_call(
        _row_affine_kernel,
        grid=(pl.cdiv(R, rt), pl.cdiv(L, lt)),
        in_specs=[
            pl.BlockSpec((rt, lt), lambda i, j: (i, j)),
            pl.BlockSpec((rt, 1), lambda i, j: (i, 0)),
            pl.BlockSpec((rt, 1), lambda i, j: (i, 0)),
        ],
        out_specs=pl.BlockSpec((rt, lt), lambda i, j: (i, j)),
        out_shape=jax.ShapeDtypeStruct((R, L), x2.dtype),
        compiler_params=pltpu.CompilerParams(
            dimension_semantics=("parallel", "parallel"),
            vmem_limit_bytes=vmem_limit,
        ),
        cost_estimate=pl.CostEstimate(
            flops=2 * R * L, transcendentals=0,
            bytes_accessed=2 * R * L * itemsize + 2 * R * 4),
    )(x2, scale_rows.astype(jnp.float32), shift_rows.astype(jnp.float32))


# --------------------------------------------------------------------------
# Kernel 3: fused one-pass instance norm over full rows (used when it fits VMEM)
# --------------------------------------------------------------------------
def _in_fused_kernel(x_ref, o_ref, *, eps, inv_hw):
    # One sweep: two independent reductions + a single fused multiply-add.
    x = x_ref[...].astype(jnp.float32)             # (rt, HW)
    s = jnp.sum(x, axis=-1, keepdims=True)
    ss = jnp.sum(x * x, axis=-1, keepdims=True)
    mean = s * inv_hw
    var = jnp.maximum(ss * inv_hw - mean * mean, 0.0)   # biased variance, clamped
    scale = lax.rsqrt(var + eps)
    shift = -mean * scale
    o_ref[...] = (x * scale + shift).astype(o_ref.dtype)


# --------------------------------------------------------------------------
# BatchNorm2d (training-mode batch stats, affine)
# --------------------------------------------------------------------------
def batch_norm_2d(x, gamma, beta, eps=1e-5):
    N, C, H, W = x.shape
    HW = H * W
    x2 = x.reshape(N * C, HW)                      # free, native-layout reshape

    row_sum, row_sumsq = _row_stats(x2)            # (N*C, 1) each, f32
    count = float(N * HW)
    s = row_sum.reshape(N, C).sum(axis=0)
    ss = row_sumsq.reshape(N, C).sum(axis=0)
    mean = s / count
    var = jnp.maximum(ss / count - mean * mean, 0.0)   # biased, clamped
    inv = lax.rsqrt(var + eps)
    scale_c = gamma.astype(jnp.float32) * inv
    shift_c = beta.astype(jnp.float32) - mean * scale_c

    scale_rows = jnp.tile(scale_c, N).reshape(N * C, 1)   # tiny
    shift_rows = jnp.tile(shift_c, N).reshape(N * C, 1)
    y2 = _row_affine(x2, scale_rows, shift_rows)
    return y2.reshape(N, C, H, W)


# --------------------------------------------------------------------------
# InstanceNorm2d (affine=False)
# --------------------------------------------------------------------------
def instance_norm_2d(x, eps=1e-5):
    N, C, H, W = x.shape
    HW = H * W
    R = N * C
    x2 = x.reshape(R, HW)
    itemsize = x.dtype.itemsize
    budget, vmem_limit = _tpu_config()
    sub = _sublane_multiple(itemsize)
    R_pad = _round_up(R, sub)

    # Fused path needs one full (rt, HW) row block per buffer within the budget
    # (in + out, each double-buffered, already accounted for by the budget).
    max_rt = (budget // max(HW * itemsize, 1)) // sub * sub
    if max_rt >= sub:
        rt = min(R_pad, max_rt)
        if R_pad >= 2 * sub:
            rt = min(rt, _round_up(pl.cdiv(R_pad, 2), sub))  # >=2 programs (v7x megacore)
        y2 = pl.pallas_call(
            functools.partial(_in_fused_kernel, eps=eps, inv_hw=1.0 / HW),
            grid=(pl.cdiv(R, rt),),
            in_specs=[pl.BlockSpec((rt, HW), lambda i: (i, 0))],
            out_specs=pl.BlockSpec((rt, HW), lambda i: (i, 0)),
            out_shape=jax.ShapeDtypeStruct((R, HW), x.dtype),
            compiler_params=pltpu.CompilerParams(
                dimension_semantics=("parallel",),
                vmem_limit_bytes=vmem_limit,
            ),
            cost_estimate=pl.CostEstimate(
                flops=6 * R * HW, transcendentals=0,
                bytes_accessed=2 * R * HW * itemsize),
        )(x2)
    else:
        # Huge-HW fallback: streaming two-pass (stats + apply).
        row_sum, row_sumsq = _row_stats(x2)
        mean = row_sum / HW
        var = jnp.maximum(row_sumsq / HW - mean * mean, 0.0)
        scale = lax.rsqrt(var + eps)
        shift = -mean * scale
        y2 = _row_affine(x2, scale, shift)
    return y2.reshape(N, C, H, W)


# --------------------------------------------------------------------------
# GroupNorm (num_groups=32, eps=1e-6, affine=True)
# --------------------------------------------------------------------------
def group_norm(x, gamma, beta, num_groups=32, eps=1e-6):
    N, C, H, W = x.shape
    G = num_groups
    assert C % G == 0, "GroupNorm requires channels divisible by num_groups"
    Cg = C // G
    HW = H * W

    # Pass 1: per-(n, g) stats over the contiguous (Cg*HW) row.
    xg = x.reshape(N * G, Cg * HW)                 # free reshape from NCHW
    row_sum, row_sumsq = _row_stats(xg)            # (N*G, 1)
    count = float(Cg * HW)
    mean = (row_sum / count).reshape(N, G)
    var = jnp.maximum((row_sumsq / count).reshape(N, G) - mean * mean, 0.0)
    inv = lax.rsqrt(var + eps)

    # Tiny finalize: fold group stats + per-channel affine into per-(n,c) scale/shift.
    inv_nc = jnp.repeat(inv, Cg, axis=1)           # (N, C)
    mean_nc = jnp.repeat(mean, Cg, axis=1)
    scale_nc = gamma.astype(jnp.float32)[None, :] * inv_nc
    shift_nc = beta.astype(jnp.float32)[None, :] - mean_nc * scale_nc

    # Pass 2: lane-dense per-row apply on (N*C, HW).
    x2 = x.reshape(N * C, HW)
    y2 = _row_affine(x2, scale_nc.reshape(N * C, 1), shift_nc.reshape(N * C, 1))
    return y2.reshape(N, C, H, W)


# --------------------------------------------------------------------------
# 'none': identity.  x * 1.0 is value-identical to x -> true no-op.
# --------------------------------------------------------------------------
def none_norm(x):
    return x


# --------------------------------------------------------------------------
# NormLayer wrapper (mirrors the PyTorch module's forward)
# --------------------------------------------------------------------------
def norm_layer(x_nchw, channels, norm_type="bn", params=None):
    norm_type = norm_type.lower()
    params = params or {}
    if norm_type == "bn":
        gamma = params.get("gamma", jnp.ones((channels,), jnp.float32))
        beta = params.get("beta", jnp.zeros((channels,), jnp.float32))
        return batch_norm_2d(x_nchw, gamma, beta, eps=1e-5)
    elif norm_type == "in":
        return instance_norm_2d(x_nchw, eps=1e-5)
    elif norm_type == "gn":
        gamma = params.get("gamma", jnp.ones((channels,), jnp.float32))
        beta = params.get("beta", jnp.zeros((channels,), jnp.float32))
        return group_norm(x_nchw, gamma, beta, num_groups=32, eps=1e-6)
    elif norm_type == "none":
        return none_norm(x_nchw)
    else:
        raise ValueError(f"Norm type {norm_type} not support.")


# --------------------------------------------------------------------------
# Pure-JAX references for sanity checks
# --------------------------------------------------------------------------
def _ref_bn(x, gamma, beta, eps=1e-5):
    mean = jnp.mean(x, axis=(0, 2, 3), keepdims=True)
    var = jnp.mean((x - mean) ** 2, axis=(0, 2, 3), keepdims=True)
    y = (x - mean) * lax.rsqrt(var + eps)
    return y * gamma.reshape(1, -1, 1, 1) + beta.reshape(1, -1, 1, 1)


def _ref_in(x, eps=1e-5):
    mean = jnp.mean(x, axis=(2, 3), keepdims=True)
    var = jnp.mean((x - mean) ** 2, axis=(2, 3), keepdims=True)
    return (x - mean) * lax.rsqrt(var + eps)


def _ref_gn(x, gamma, beta, G=32, eps=1e-6):
    N, C, H, W = x.shape
    xr = x.reshape(N, G, C // G, H, W)
    mean = jnp.mean(xr, axis=(2, 3, 4), keepdims=True)
    var = jnp.mean((xr - mean) ** 2, axis=(2, 3, 4), keepdims=True)
    y = ((xr - mean) * lax.rsqrt(var + eps)).reshape(N, C, H, W)
    return y * gamma.reshape(1, -1, 1, 1) + beta.reshape(1, -1, 1, 1)


if __name__ == "__main__":
    key = jax.random.PRNGKey(0)
    # C divisible by 32 (GroupNorm requirement); 16x16 spatial -> HW=256 (lane-dense).
    N, C, H, W = 2, 64, 16, 16
    x = jax.random.normal(key, (N, C, H, W), dtype=jnp.float32)

    gamma = jnp.ones((C,), jnp.float32)
    beta = jnp.zeros((C,), jnp.float32)
    params = {"gamma": gamma, "beta": beta}

    out_bn = jax.block_until_ready(norm_layer(x, C, "bn", params))
    out_in = jax.block_until_ready(norm_layer(x, C, "in"))
    out_gn = jax.block_until_ready(norm_layer(x, C, "gn", params))
    out_id = jax.block_until_ready(norm_layer(x, C, "none"))

    np.testing.assert_allclose(np.asarray(out_bn), np.asarray(_ref_bn(x, gamma, beta)),
                               rtol=2e-5, atol=2e-5)
    np.testing.assert_allclose(np.asarray(out_in), np.asarray(_ref_in(x)),
                               rtol=2e-5, atol=2e-5)
    np.testing.assert_allclose(np.asarray(out_gn), np.asarray(_ref_gn(x, gamma, beta)),
                               rtol=2e-5, atol=2e-5)
    np.testing.assert_allclose(np.asarray(out_id), np.asarray(x), rtol=0, atol=0)

    print("KERNEL_OK")
</pallas_src>

<mosaic_0001>
module attributes {stable_mosaic.version = 11 : i64} {
  func.func @_row_stats_kernel(%arg0: i32, %arg1: i32, %arg2: memref<64x256xf32, #tpu.memory_space<vmem>>, %arg3: memref<64x1xf32, #tpu.memory_space<vmem>>, %arg4: memref<64x1xf32, #tpu.memory_space<vmem>>) attributes {dimension_semantics = [#tpu.dimension_semantics<parallel>, #tpu.dimension_semantics<arbitrary>], iteration_bounds = array<i64: 2, 1>, scalar_prefetch = 0 : i64, scratch_operands = 0 : i64, tpu.core_type = #tpu.core_type<tc>, window_params = [{transform_indices = @transform_0, window_bounds = array<i64: 64, 256>}, {transform_indices = @transform_1, window_bounds = array<i64: 64, 1>}, {transform_indices = @transform_2, window_bounds = array<i64: 64, 1>}]} {
    %c0_i32 = arith.constant 0 : i32
    %0 = arith.cmpi eq, %arg1, %c0_i32 : i32
    %1 = arith.extui %0 : i1 to i32
    %c0_i32_0 = arith.constant 0 : i32
    %2 = arith.cmpi ne, %1, %c0_i32_0 : i32
    scf.if %2 {
      %cst_11 = arith.constant 0.000000e+00 : f32
      %15 = vector.broadcast %cst_11 : f32 to vector<64x1xf32>
      %c0_12 = arith.constant 0 : index
      %c0_13 = arith.constant 0 : index
      %16 = vector.load %arg3[%c0_12, %c0_13] : memref<64x1xf32, #tpu.memory_space<vmem>>, vector<64x1xf32>
      tpu.vector_store %arg3[%c0_12, %c0_13], %15 {strides = array<i32>} : memref<64x1xf32, #tpu.memory_space<vmem>>, vector<64x1xf32>,
      %cst_14 = arith.constant 0.000000e+00 : f32
      %17 = vector.broadcast %cst_14 : f32 to vector<64x1xf32>
      %c0_15 = arith.constant 0 : index
      %c0_16 = arith.constant 0 : index
      %18 = vector.load %arg4[%c0_15, %c0_16] : memref<64x1xf32, #tpu.memory_space<vmem>>, vector<64x1xf32>
      tpu.vector_store %arg4[%c0_15, %c0_16], %17 {strides = array<i32>} : memref<64x1xf32, #tpu.memory_space<vmem>>, vector<64x1xf32>,
    } else {
    }
    %c0 = arith.constant 0 : index
    %c0_1 = arith.constant 0 : index
    %3 = vector.load %arg2[%c0, %c0_1] : memref<64x256xf32, #tpu.memory_space<vmem>>, vector<64x256xf32>
    %c0_2 = arith.constant 0 : index
    %c0_3 = arith.constant 0 : index
    %4 = vector.load %arg3[%c0_2, %c0_3] : memref<64x1xf32, #tpu.memory_space<vmem>>, vector<64x1xf32>
    %cst = arith.constant dense<0.000000e+00> : vector<64xf32>
    %5 = vector.multi_reduction <add>, %3, %cst [1] : vector<64x256xf32> to vector<64xf32>
    %6 = vector.shape_cast %5 : vector<64xf32> to vector<64x1xf32>
    %7 = arith.addf %4, %6 : vector<64x1xf32>
    %c0_4 = arith.constant 0 : index
    %c0_5 = arith.constant 0 : index
    %8 = vector.load %arg3[%c0_4, %c0_5] : memref<64x1xf32, #tpu.memory_space<vmem>>, vector<64x1xf32>
    tpu.vector_store %arg3[%c0_4, %c0_5], %7 {strides = array<i32>} : memref<64x1xf32, #tpu.memory_space<vmem>>, vector<64x1xf32>,
    %c0_6 = arith.constant 0 : index
    %c0_7 = arith.constant 0 : index
    %9 = vector.load %arg4[%c0_6, %c0_7] : memref<64x1xf32, #tpu.memory_space<vmem>>, vector<64x1xf32>
    %10 = arith.mulf %3, %3 : vector<64x256xf32>
    %cst_8 = arith.constant dense<0.000000e+00> : vector<64xf32>
    %11 = vector.multi_reduction <add>, %10, %cst_8 [1] : vector<64x256xf32> to vector<64xf32>
    %12 = vector.shape_cast %11 : vector<64xf32> to vector<64x1xf32>
    %13 = arith.addf %9, %12 : vector<64x1xf32>
    %c0_9 = arith.constant 0 : index
    %c0_10 = arith.constant 0 : index
    %14 = vector.load %arg4[%c0_9, %c0_10] : memref<64x1xf32, #tpu.memory_space<vmem>>, vector<64x1xf32>
    tpu.vector_store %arg4[%c0_9, %c0_10], %13 {strides = array<i32>} : memref<64x1xf32, #tpu.memory_space<vmem>>, vector<64x1xf32>,
    return
  }
  func.func @transform_0(%arg0: i32, %arg1: i32) -> (i32, i32) {
    %c0_i32 = arith.constant 0 : i32
    return %arg0, %arg1 : i32, i32
  }
  func.func @transform_1(%arg0: i32, %arg1: i32) -> (i32, i32) {
    %c0_i32 = arith.constant 0 : i32
    %c0_i32_0 = arith.constant 0 : i32
    return %arg0, %c0_i32 : i32, i32
  }
  func.func @transform_2(%arg0: i32, %arg1: i32) -> (i32, i32) {
    %c0_i32 = arith.constant 0 : i32
    %c0_i32_0 = arith.constant 0 : i32
    return %arg0, %c0_i32 : i32, i32
  }
}

</mosaic_0001>

<llo_original>
// kernel: tpu_custom_call.1
$region0: #{tpu_custom_call.1}
  #allocation0 [shape = 'u32[]', space=smem, size = 0x4, offset = 0x4, fixed_abs, tag = 'smem constant byte address 0x4 - core index']
  #allocation1 [shape = 'u32[144,128]{1,0:T(1,128)}', space=vmem, size = 0x12000, scoped, tag = 'internal scratch']
  %s0 = inlined_call_operand.hbm [shape: f32[128,256], index: 0, kind: input, shape index: {}]
  %s1 = inlined_call_operand.vmem [shape: f32[128,1], index: 1, kind: output, shape index: {0}]
  %s2 = inlined_call_operand.vmem [shape: f32[128,1], index: 2, kind: output, shape index: {1}]
  %3 = xla_tuple %s1, %s2
  %s4 = sld [smem:[#allocation0]]
  $region53: #{tpu_custom_call.1} parent=0
    _
  %s6 = ssub.s32 1, %s4
  %s7 = scalar_select 0, %s6, %s4
  $region1: #{tpu_custom_call.1} parent=0
    #allocation2 [shape = 'u8[131072]{0}', space=vmem, size = 0x20000, scoped, tag = 'input window, operand 0']
    #allocation3 [shape = 's32[2]{0}', space=sflag, size = 0x8, scoped, tag = 'scoped memory for tpu_custom_call.1']
    %8 = vsyncpa [#allocation3], 0
    %s9 = scalar_lea.sflag [#allocation3], 1
    %10 = vsyncpa %s9, 0
    loop: start=0, step=1, limit=4
    $region2: #{tpu_custom_call.1} parent=1 // loop_pre_header
      _
    $region3: #{tpu_custom_call.1} parent=1 // loop_header
      %s12 = sphi 0, %s16
      %p13 = scmp.ge.s32.totalorder %s12, 4
      %s19 = sphi 0, %s31
      %s20 = sphi 0, %s27
      %s21 = sphi 0, %s19
      %s22 = sphi 0, %s20
      %s23 = sphi 0, %s21
      %s24 = sphi 0, %s22
      %s36 = sphi 0, %s38
      %s39 = sphi 0, %s36
      %s40 = sphi 0, %s39
      %s56 = sphi 0, %s40
      %s62 = sphi 0, %s64
      %s65 = sphi 0, %s62
      %s66 = sphi 0, %s65
      %s82 = sphi 0, %s66
      %s88 = sphi 0, %s90
      %s91 = sphi 0, %s88
      %s92 = sphi 0, %s91
      %s108 = sphi 0, %s92
    $region4: #{tpu_custom_call.1} parent=1 // loop_header_branch
      %15 = sbr.rel (%p13) target = $region8
    $region5: #{tpu_custom_call.1} parent=1 // loop_body
      %s17 = ssub.s32 %s12, 1
      %s18 = ssub.s32 %s12, 2
      %s25 = sadd.s32 1, %s20
      %p26 = scmp.ge.s32.totalorder %s25, 1
      %s27 = scalar_select %p26, 0, %s25
      %s28 = sadd.s32 1, %s19
      %s29 = scalar_select %p26, %s28, %s19
      %p30 = scmp.ge.s32.totalorder %s29, 2
      %s31 = scalar_select %p30, 0, %s29
      %s32 = ssub.s32 %s19, %s31
      %s33 = ssub.s32 %s20, %s27
      %s34 = sor.u32 %s32, %s33
      %p35 = scmp.eq.s32.totalorder %s34, 0
      %s37 = sadd.s32 %s36, 1
      %s38 = scalar_select %p35, %s36, %s37
      %p41 = pneg %p35
      %p42 = scmp.eq.s32.totalorder %s12, 1
      %p43 = por %p41, %p42
      %p44 = scmp.ne.s32.totalorder %s36, %s39
      %p45 = scmp.eq.s32.totalorder %s12, 0
      %p46 = por %p44, %p45
      %p47 = scmp.ne.s32.totalorder %s36, %s39
      %p48 = scmp.eq.s32.totalorder %s17, 1
      %p49 = por %p47, %p48
      %p50 = scmp.ne.s32.totalorder %s39, %s40
      %p51 = scmp.eq.s32.totalorder %s17, 0
      %p52 = por %p50, %p51
      %p53 = scmp.ne.s32.totalorder %s39, %s40
      %p54 = scmp.eq.s32.totalorder %s18, 1
      %p55 = por %p53, %p54
      %p57 = scmp.ne.s32.totalorder %s40, %s56
      %p58 = scmp.eq.s32.totalorder %s18, 0
      %p59 = por %p57, %p58
      %s60 = ssub.s32 %s19, %s31
      %p61 = scmp.eq.s32.totalorder %s60, 0
      %s63 = sadd.s32 %s62, 1
      %s64 = scalar_select %p61, %s62, %s63
      %p67 = pneg %p61
      %p68 = scmp.eq.s32.totalorder %s12, 1
      %p69 = por %p67, %p68
      %p70 = scmp.ne.s32.totalorder %s62, %s65
      %p71 = scmp.eq.s32.totalorder %s12, 0
      %p72 = por %p70, %p71
      %p73 = scmp.ne.s32.totalorder %s62, %s65
      %p74 = scmp.eq.s32.totalorder %s17, 1
      %p75 = por %p73, %p74
      %p76 = scmp.ne.s32.totalorder %s65, %s66
      %p77 = scmp.eq.s32.totalorder %s17, 0
      %p78 = por %p76, %p77
      %p79 = scmp.ne.s32.totalorder %s65, %s66
      %p80 = scmp.eq.s32.totalorder %s18, 1
      %p81 = por %p79, %p80
      %p83 = scmp.ne.s32.totalorder %s66, %s82
      %p84 = scmp.eq.s32.totalorder %s18, 0
      %p85 = por %p83, %p84
      %s86 = ssub.s32 %s19, %s31
      %p87 = scmp.eq.s32.totalorder %s86, 0
      %s89 = sadd.s32 %s88, 1
      %s90 = scalar_select %p87, %s88, %s89
      %p93 = pneg %p87
      %p94 = scmp.eq.s32.totalorder %s12, 1
      %p95 = por %p93, %p94
      %p96 = scmp.ne.s32.totalorder %s88, %s91
      %p97 = scmp.eq.s32.totalorder %s12, 0
      %p98 = por %p96, %p97
      %p99 = scmp.ne.s32.totalorder %s88, %s91
      %p100 = scmp.eq.s32.totalorder %s17, 1
      %p101 = por %p99, %p100
      %p102 = scmp.ne.s32.totalorder %s91, %s92
      %p103 = scmp.eq.s32.totalorder %s17, 0
      %p104 = por %p102, %p103
      %p105 = scmp.ne.s32.totalorder %s91, %s92
      %p106 = scmp.eq.s32.totalorder %s18, 1
      %p107 = por %p105, %p106
      %p109 = scmp.ne.s32.totalorder %s92, %s108
      %p110 = scmp.eq.s32.totalorder %s18, 0
      %p111 = por %p109, %p110
      %p112 = scmp.le.s32.totalorder 1, %s12
      %p113 = scmp.lt.s32.totalorder %s12, 3
      %p114 = pnand %p112, %p113
      %p115 = pneg %p114
      // Predicated region
      $region9: #{tpu_custom_call.1} parent=5 // pred_check
        _
      $region10: #{tpu_custom_call.1} parent=5 // pred_check_branch
        %117 = sbr.rel (%p114) target = $region12
      $region11: #{tpu_custom_call.1} parent=5 // pred_region
        %s118 = ssub.s32 %s12, 1
      $region12: #{tpu_custom_call.1} parent=5 // pred_fallthru
        _
      %p119 = scmp.lt.s32.totalorder %s12, 2
      // Predicated region
      $region13: #{tpu_custom_call.1} parent=5 // pred_check
        %p120 = pneg %p119
      $region14: #{tpu_custom_call.1} parent=5 // pred_check_branch
        %122 = sbr.rel (%p120) target = $region16
      $region15: #{tpu_custom_call.1} parent=5 // pred_region
        // Predicated region
        $region17: #{tpu_custom_call.1} parent=15 // pred_check
          %p123 = pneg %p46
        $region18: #{tpu_custom_call.1} parent=15 // pred_check_branch
          %125 = sbr.rel (%p123) target = $region20
        $region19: #{tpu_custom_call.1} parent=15 // pred_region
          %s126 = sand.u32 %s36, 1
          %s127 = scalar_lea.sflag [#allocation3], %s126
          %s128 = sand.u32 %s36, 1
          %s129 = smul.addr %s128, 128
          %s130 = scalar_lea.vmem [#allocation2], %s129
          %s131 = smul.u32 8, %s19
          %s132 = smul.u32 2, %s20
          %s134 = ssub.s32 2048, 2048
          %135 = vsyncadd %s127, %s134
          %s136 = smul.addr %s131, 2
          %s137 = sadd.s32 %s132, %s136
          %s138 = smul.addr %s137, 128
          %s139 = scalar_lea.hbm %s0, %s138
          %s140 = sshll.u32 %s130, 4
          %s141 = int_to_ptr.vmem [resolvable:$true] %s140
          %146 = dma.hbm_to_vmem [thread:$0]  %s139, 2048, %s141, %s127, 256, 256, 16
        $region20: #{tpu_custom_call.1} parent=15 // pred_fallthru
          _
      $region16: #{tpu_custom_call.1} parent=5 // pred_fallthru
        _
      %p147 = scmp.le.s32.totalorder 1, %s12
      %p148 = scmp.lt.s32.totalorder %s12, 3
      %p149 = pnand %p147, %p148
      %p150 = pneg %p149
      // Predicated region
      $region21: #{tpu_custom_call.1} parent=5 // pred_check
        _
      $region22: #{tpu_custom_call.1} parent=5 // pred_check_branch
        %152 = sbr.rel (%p149) target = $region24
      $region23: #{tpu_custom_call.1} parent=5 // pred_region
        %s153 = ssub.s32 %s12, 1
        %s154 = sand.u32 %s39, 1
        %s155 = scalar_lea.sflag [#allocation3], %s154
        %s156 = sand.u32 %s39, 1
        %s157 = smul.addr %s156, 128
        %s158 = scalar_lea.vmem [#allocation2], %s157
        // Predicated region
        $region25: #{tpu_custom_call.1} parent=23 // pred_check
          %p159 = pneg %p52
        $region26: #{tpu_custom_call.1} parent=23 // pred_check_branch
          %161 = sbr.rel (%p159) target = $region28
        $region27: #{tpu_custom_call.1} parent=23 // pred_region
          %162 = dma.done %s155, 2048
        $region28: #{tpu_custom_call.1} parent=23 // pred_fallthru
          _
        %s163 = sand.u32 %s39, 1
        %s164 = scalar_lea.sflag [#allocation3], %s163
        %s165 = sand.u32 %s39, 1
        %s166 = smul.addr %s165, 128
        %s167 = scalar_lea.vmem [#allocation2], %s166
        %p168 = pneg %p52
        %p169 = pneg %p49
        %p170 = pneg %p78
        %p171 = pneg %p75
        %s172 = smul.u32 8, %s21
        %p173 = scmp.lt.s32.totalorder %s172, 15
        %s174 = scalar_select %p173, %s172, 15
        %s175 = smul.addr %s174, 8
        %s176 = scalar_lea.vmem %s1, %s175
        %p177 = pneg %p104
        %p178 = pneg %p101
        %s179 = smul.u32 8, %s21
        %p180 = scmp.lt.s32.totalorder %s179, 15
        %s181 = scalar_select %p180, %s179, 15
        %s182 = smul.addr %s181, 8
        %s183 = scalar_lea.vmem %s2, %s182
        %s184 = smul.u32 8, %s21
        %s185 = smul.u32 2, %s22
        %s186 = smul.u32 8, %s21
        %p187 = scmp.lt.s32.totalorder %s186, 15
        %s188 = scalar_select %p187, %s186, 15
        %s189 = smul.addr %s188, 8
        %s190 = scalar_lea.vmem %s1, %s189
        %s191 = smul.u32 8, %s21
        %s192 = smul.u32 8, %s21
        %p193 = scmp.lt.s32.totalorder %s192, 15
        %s194 = scalar_select %p193, %s192, 15
        %s195 = smul.addr %s194, 8
        %s196 = scalar_lea.vmem %s2, %s195
        %s197 = smul.u32 8, %s21
        %p198 = scmp.eq.s32.totalorder %s22, 0
        // Predicated region
        $region29: #{tpu_custom_call.1} parent=23 // pred_check
          %p199 = pneg %p198
        $region30: #{tpu_custom_call.1} parent=23 // pred_check_branch
          %201 = sbr.rel (%p199) target = $region32
        $region31: #{tpu_custom_call.1} parent=23 // pred_region
          %vm202 = vcmask 7168
          %203 = vst.msk [vmem:[%s190] sm:$0xff] %vm202, 0.0
          %204 = vst.msk [vmem:[%s190 + $0x8] sm:$0xff] %vm202, 0.0
          %205 = vst.msk [vmem:[%s190 + $0x10] sm:$0xff] %vm202, 0.0
          %206 = vst.msk [vmem:[%s190 + $0x18] sm:$0xff] %vm202, 0.0
          %207 = vst.msk [vmem:[%s190 + $0x20] sm:$0xff] %vm202, 0.0
          %208 = vst.msk [vmem:[%s190 + $0x28] sm:$0xff] %vm202, 0.0
          %209 = vst.msk [vmem:[%s190 + $0x30] sm:$0xff] %vm202, 0.0
          %210 = vst.msk [vmem:[%s190 + $0x38] sm:$0xff] %vm202, 0.0
          %211 = vst.msk [vmem:[%s196] sm:$0xff] %vm202, 0.0
          %212 = vst.msk [vmem:[%s196 + $0x8] sm:$0xff] %vm202, 0.0
          %213 = vst.msk [vmem:[%s196 + $0x10] sm:$0xff] %vm202, 0.0
          %214 = vst.msk [vmem:[%s196 + $0x18] sm:$0xff] %vm202, 0.0
          %215 = vst.msk [vmem:[%s196 + $0x20] sm:$0xff] %vm202, 0.0
          %216 = vst.msk [vmem:[%s196 + $0x28] sm:$0xff] %vm202, 0.0
          %217 = vst.msk [vmem:[%s196 + $0x30] sm:$0xff] %vm202, 0.0
          %218 = vst.msk [vmem:[%s196 + $0x38] sm:$0xff] %vm202, 0.0
        $region32: #{tpu_custom_call.1} parent=23 // pred_fallthru
          _
        %v219 = vld [vmem:[%s158] sm:$0xff]
        %v220 = vld [vmem:[%s158 + $0x8] sm:$0xff]
        %v221 = vld [vmem:[%s158 + $0x10] sm:$0xff]
        %v222 = vld [vmem:[%s158 + $0x18] sm:$0xff]
        %v223 = vld [vmem:[%s158 + $0x20] sm:$0xff]
        %v224 = vld [vmem:[%s158 + $0x28] sm:$0xff]
        %v225 = vld [vmem:[%s158 + $0x30] sm:$0xff]
        %v226 = vld [vmem:[%s158 + $0x38] sm:$0xff]
        %v227 = vld [vmem:[%s158 + $0x40] sm:$0xff]
        %v228 = vld [vmem:[%s158 + $0x48] sm:$0xff]
        %v229 = vld [vmem:[%s158 + $0x50] sm:$0xff]
        %v230 = vld [vmem:[%s158 + $0x58] sm:$0xff]
        %v231 = vld [vmem:[%s158 + $0x60] sm:$0xff]
        %v232 = vld [vmem:[%s158 + $0x68] sm:$0xff]
        %v233 = vld [vmem:[%s158 + $0x70] sm:$0xff]
        %v234 = vld [vmem:[%s158 + $0x78] sm:$0xff]
        %v235 = vld [vmem:[%s190] sm:$0xff]
        %v236 = vld [vmem:[%s190 + $0x8] sm:$0xff]
        %v237 = vld [vmem:[%s190 + $0x10] sm:$0xff]
        %v238 = vld [vmem:[%s190 + $0x18] sm:$0xff]
        %v239 = vld [vmem:[%s190 + $0x20] sm:$0xff]
        %v240 = vld [vmem:[%s190 + $0x28] sm:$0xff]
        %v241 = vld [vmem:[%s190 + $0x30] sm:$0xff]
        %v242 = vld [vmem:[%s190 + $0x38] sm:$0xff]
        %v243 = vadd.f32 %v219, %v220
        %244 = vadd.xlane.f32.xlu0 %v243
        %v245 = vpop.xlane.xlu0 %244
        %v246 = vadd.f32 %v221, %v222
        %247 = vadd.xlane.f32.xlu0 %v246
        %v248 = vpop.xlane.xlu0 %247
        %v249 = vadd.f32 %v223, %v224
        %250 = vadd.xlane.f32.xlu0 %v249
        %v251 = vpop.xlane.xlu0 %250
        %v252 = vadd.f32 %v225, %v226
        %253 = vadd.xlane.f32.xlu0 %v252
        %v254 = vpop.xlane.xlu0 %253
        %v255 = vadd.f32 %v227, %v228
        %256 = vadd.xlane.f32.xlu0 %v255
        %v257 = vpop.xlane.xlu0 %256
        %v258 = vadd.f32 %v229, %v230
        %259 = vadd.xlane.f32.xlu0 %v258
        %v260 = vpop.xlane.xlu0 %259
        %v261 = vadd.f32 %v231, %v232
        %262 = vadd.xlane.f32.xlu0 %v261
        %v263 = vpop.xlane.xlu0 %262
        %v264 = vadd.f32 %v233, %v234
        %265 = vadd.xlane.f32.xlu0 %v264
        %v266 = vpop.xlane.xlu0 %265
        %v267 = vadd.f32 %v235, %v245
        %v268 = vadd.f32 %v236, %v248
        %v269 = vadd.f32 %v237, %v251
        %v270 = vadd.f32 %v238, %v254
        %v271 = vadd.f32 %v239, %v257
        %v272 = vadd.f32 %v240, %v260
        %v273 = vadd.f32 %v241, %v263
        %v274 = vadd.f32 %v242, %v266
        %vm275 = vcmask 7168
        %276 = vst.msk [vmem:[%s190] sm:$0xff] %vm275, %v267
        %277 = vst.msk [vmem:[%s190 + $0x8] sm:$0xff] %vm275, %v268
        %278 = vst.msk [vmem:[%s190 + $0x10] sm:$0xff] %vm275, %v269
        %279 = vst.msk [vmem:[%s190 + $0x18] sm:$0xff] %vm275, %v270
        %280 = vst.msk [vmem:[%s190 + $0x20] sm:$0xff] %vm275, %v271
        %281 = vst.msk [vmem:[%s190 + $0x28] sm:$0xff] %vm275, %v272
        %282 = vst.msk [vmem:[%s190 + $0x30] sm:$0xff] %vm275, %v273
        %283 = vst.msk [vmem:[%s190 + $0x38] sm:$0xff] %vm275, %v274
        %v284 = vld [vmem:[%s196] sm:$0xff]
        %v285 = vld [vmem:[%s196 + $0x8] sm:$0xff]
        %v286 = vld [vmem:[%s196 + $0x10] sm:$0xff]
        %v287 = vld [vmem:[%s196 + $0x18] sm:$0xff]
        %v288 = vld [vmem:[%s196 + $0x20] sm:$0xff]
        %v289 = vld [vmem:[%s196 + $0x28] sm:$0xff]
        %v290 = vld [vmem:[%s196 + $0x30] sm:$0xff]
        %v291 = vld [vmem:[%s196 + $0x38] sm:$0xff]
        %v292 = vmul.f32 %v219, %v219
        %v293 = vmul.f32 %v220, %v220
        %v294 = vmul.f32 %v221, %v221
        %v295 = vmul.f32 %v222, %v222
        %v296 = vmul.f32 %v223, %v223
        %v297 = vmul.f32 %v224, %v224
        %v298 = vmul.f32 %v225, %v225
        %v299 = vmul.f32 %v226, %v226
        %v300 = vmul.f32 %v227, %v227
        %v301 = vmul.f32 %v228, %v228
        %v302 = vmul.f32 %v229, %v229
        %v303 = vmul.f32 %v230, %v230
        %v304 = vmul.f32 %v231, %v231
        %v305 = vmul.f32 %v232, %v232
        %v306 = vmul.f32 %v233, %v233
        %v307 = vmul.f32 %v234, %v234
        %v308 = vadd.f32 %v292, %v293
        %309 = vadd.xlane.f32.xlu0 %v308
        %v310 = vpop.xlane.xlu0 %309
        %v311 = vadd.f32 %v294, %v295
        %312 = vadd.xlane.f32.xlu0 %v311
        %v313 = vpop.xlane.xlu0 %312
        %v314 = vadd.f32 %v296, %v297
        %315 = vadd.xlane.f32.xlu0 %v314
        %v316 = vpop.xlane.xlu0 %315
        %v317 = vadd.f32 %v298, %v299
        %318 = vadd.xlane.f32.xlu0 %v317
        %v319 = vpop.xlane.xlu0 %318
        %v320 = vadd.f32 %v300, %v301
        %321 = vadd.xlane.f32.xlu0 %v320
        %v322 = vpop.xlane.xlu0 %321
        %v323 = vadd.f32 %v302, %v303
        %324 = vadd.xlane.f32.xlu0 %v323
        %v325 = vpop.xlane.xlu0 %324
        %v326 = vadd.f32 %v304, %v305
        %327 = vadd.xlane.f32.xlu0 %v326
        %v328 = vpop.xlane.xlu0 %327
        %v329 = vadd.f32 %v306, %v307
        %330 = vadd.xlane.f32.xlu0 %v329
        %v331 = vpop.xlane.xlu0 %330
        %v332 = vadd.f32 %v284, %v310
        %v333 = vadd.f32 %v285, %v313
        %v334 = vadd.f32 %v286, %v316
        %v335 = vadd.f32 %v287, %v319
        %v336 = vadd.f32 %v288, %v322
        %v337 = vadd.f32 %v289, %v325
        %v338 = vadd.f32 %v290, %v328
        %v339 = vadd.f32 %v291, %v331
        %340 = vst.msk [vmem:[%s196] sm:$0xff] %vm275, %v332
        %341 = vst.msk [vmem:[%s196 + $0x8] sm:$0xff] %vm275, %v333
        %342 = vst.msk [vmem:[%s196 + $0x10] sm:$0xff] %vm275, %v334
        %343 = vst.msk [vmem:[%s196 + $0x18] sm:$0xff] %vm275, %v335
        %344 = vst.msk [vmem:[%s196 + $0x20] sm:$0xff] %vm275, %v336
        %345 = vst.msk [vmem:[%s196 + $0x28] sm:$0xff] %vm275, %v337
        %346 = vst.msk [vmem:[%s196 + $0x30] sm:$0xff] %vm275, %v338
        %347 = vst.msk [vmem:[%s196 + $0x38] sm:$0xff] %vm275, %v339
        %s348 = smul.u32 8, %s21
        %p349 = scmp.lt.s32.totalorder %s348, 15
        %s350 = scalar_select %p349, %s348, 15
        %s351 = smul.addr %s350, 8
        %s352 = scalar_lea.vmem %s1, %s351
        %s353 = smul.u32 8, %s21
        %p354 = scmp.lt.s32.totalorder %s353, 15
        %s355 = scalar_select %p354, %s353, 15
        %s356 = smul.addr %s355, 8
        %s357 = scalar_lea.vmem %s2, %s356
        // Predicated region
        $region33: #{tpu_custom_call.1} parent=23 // pred_check
          %p358 = pneg %p75
        $region34: #{tpu_custom_call.1} parent=23 // pred_check_branch
          %360 = sbr.rel (%p358) target = $region36
        $region35: #{tpu_custom_call.1} parent=23 // pred_region
          %s361 = smul.u32 8, %s21
        $region36: #{tpu_custom_call.1} parent=23 // pred_fallthru
          _
        // Predicated region
        $region37: #{tpu_custom_call.1} parent=23 // pred_check
          %p362 = pneg %p101
        $region38: #{tpu_custom_call.1} parent=23 // pred_check_branch
          %364 = sbr.rel (%p362) target = $region40
        $region39: #{tpu_custom_call.1} parent=23 // pred_region
          %s365 = smul.u32 8, %s21
        $region40: #{tpu_custom_call.1} parent=23 // pred_fallthru
          _
      $region24: #{tpu_custom_call.1} parent=5 // pred_fallthru
        _
      %p366 = scmp.le.s32.totalorder 2, %s12
      // Predicated region
      $region41: #{tpu_custom_call.1} parent=5 // pred_check
        %p367 = pneg %p366
      $region42: #{tpu_custom_call.1} parent=5 // pred_check_branch
        %369 = sbr.rel (%p367) target = $region44
      $region43: #{tpu_custom_call.1} parent=5 // pred_region
        %s370 = ssub.s32 %s12, 2
        // Predicated region
        $region45: #{tpu_custom_call.1} parent=43 // pred_check
          %p371 = pneg %p81
        $region46: #{tpu_custom_call.1} parent=43 // pred_check_branch
          %373 = sbr.rel (%p371) target = $region48
        $region47: #{tpu_custom_call.1} parent=43 // pred_region
          %s374 = smul.u32 8, %s23
          %p375 = scmp.lt.s32.totalorder %s374, 15
          %s376 = scalar_select %p375, %s374, 15
          %s377 = smul.addr %s376, 8
          %s378 = scalar_lea.vmem %s1, %s377
        $region48: #{tpu_custom_call.1} parent=43 // pred_fallthru
          _
        // Predicated region
        $region49: #{tpu_custom_call.1} parent=43 // pred_check
          %p379 = pneg %p107
        $region50: #{tpu_custom_call.1} parent=43 // pred_check_branch
          %381 = sbr.rel (%p379) target = $region52
        $region51: #{tpu_custom_call.1} parent=43 // pred_region
          %s382 = smul.u32 8, %s23
          %p383 = scmp.lt.s32.totalorder %s382, 15
          %s384 = scalar_select %p383, %s382, 15
          %s385 = smul.addr %s384, 8
          %s386 = scalar_lea.vmem %s2, %s385
        $region52: #{tpu_custom_call.1} parent=43 // pred_fallthru
          _
      $region44: #{tpu_custom_call.1} parent=5 // pred_fallthru
        _
    $region6: #{tpu_custom_call.1} parent=1 // loop_footer
      %s16 = sadd.s32 1, %s12
    $region7: #{tpu_custom_call.1} parent=1 // loop_footer_branch
      %11 = sbr.rel target = $region3
    $region8: #{tpu_custom_call.1} parent=1 // loop_exit
      _
    %387 = vsyncpa [#allocation3], 1
    %s388 = scalar_lea.sflag [#allocation3], 1
    %389 = vsyncpa %s388, 1

</llo_original>
